<compile_context>
chip_gen: v6e
topology: v6e:2x2x1
jax: 0.10.0
libtpu: 0.0.40
codegen_flags: <defaults>
</compile_context>

<pallas_src>
import jax
import jax.numpy as jnp
from jax.experimental import pallas as pl
from jax.experimental.pallas import tpu as pltpu

_LANE = 128      # TPU lane width
_HIDDEN = 128    # fixed hidden width of l3_combine


# --------------------------------------------------------------------------- #
# helpers
# --------------------------------------------------------------------------- #
def _row_align(dtype):
    """Sublane alignment for the batch (second-to-last) block dim."""
    return max(8, 32 // jnp.dtype(dtype).itemsize)   # 8 f32, 16 bf16, 32 int8


def _vmem_budget_bytes():
    """Explicit scoped-VMEM budget, leaving headroom below physical capacity."""
    try:
        cap = int(pltpu.get_tpu_info().vmem_capacity_bytes)
    except Exception:
        cap = 64 << 20                       # conservative: v7x per-TC VMEM
    return min((cap * 3) // 4, 100 << 20)    # ~48 MiB v7x, ~96 MiB v5e/v6e


def _pick_tile_b(B, row_align, max_tile=512):
    """Default batch tile: prefer >=2 grid steps (v7x megacore), cap the rows."""
    if B <= 2 * row_align:
        return B                             # single full-extent block (legal)
    half = ((B // 2) // row_align) * row_align
    return max(row_align, min(max_tile, half))


def _const_spec(block_shape, index_map, single_buffer):
    """BlockSpec for an operand whose block index never changes (no need to
    double-buffer it)."""
    if single_buffer:
        return pl.BlockSpec(block_shape, index_map,
                            pipeline_mode=pl.Buffered(1))
    return pl.BlockSpec(block_shape, index_map)


# --------------------------------------------------------------------------- #
# parameter preparation (call ONCE, or under jit with constant weights)
# --------------------------------------------------------------------------- #
def prepare_params(w1, b1, w2, b2, *, stream_dtype=None, force_mode=None):
    """Precompute kernel-ready parameters (hoisted out of the hot path).

    w1: (emb_dim, 128)   b1: (1, 128)
    w2: (128, C)         b2: (1, C)      (weights transposed vs. PyTorch)
    stream_dtype: e.g. jnp.bfloat16 to halve x / weight HBM traffic on
        memory-bound shapes; accumulation and bias adds stay f32.
    """
    E, H = w1.shape
    H2, C = w2.shape
    assert H == _HIDDEN and H2 == _HIDDEN
    assert b1.shape == (1, H) and b2.shape == (1, C)

    C_pad = pl.cdiv(C, _LANE) * _LANE
    wdtype = jnp.dtype(stream_dtype) if stream_dtype is not None else jnp.dtype(jnp.float32)

    # The fold is mathematically exact (no activation between the Linears) but
    # only worthwhile when it does not inflate FLOPs / weight bytes and the
    # fused (E, C_pad) weight comfortably fits the VMEM budget.
    fold_is_cheaper = E * C_pad <= _HIDDEN * (E + C_pad)
    fits_vmem = E * C_pad * wdtype.itemsize <= _vmem_budget_bytes() // 4
    mode = "fused" if (fold_is_cheaper and fits_vmem) else "two_stage"
    if force_mode is not None:
        mode = force_mode

    params = {"mode": mode, "emb_dim": E, "num_classes": C, "c_pad": C_pad,
              "stream_dtype": stream_dtype}

    if mode == "fused":
        w = jnp.dot(w1.astype(jnp.float32), w2.astype(jnp.float32),
                    preferred_element_type=jnp.float32)                 # (E, C)
        b = jnp.dot(b1.astype(jnp.float32), w2.astype(jnp.float32),
                    preferred_element_type=jnp.float32) + b2            # (1, C)
        if C_pad != C:
            w = jnp.pad(w, ((0, 0), (0, C_pad - C)))
            b = jnp.pad(b, ((0, 0), (0, C_pad - C)))
        params["w"] = w.astype(wdtype)
        params["b"] = b.astype(jnp.float32)     # bias add on f32 accumulator
    else:
        w2p = w2.astype(jnp.float32)
        b2p = b2.astype(jnp.float32)
        if C_pad != C:
            w2p = jnp.pad(w2p, ((0, 0), (0, C_pad - C)))
            b2p = jnp.pad(b2p, ((0, 0), (0, C_pad - C)))
        params["w1"] = w1.astype(wdtype)
        params["b1"] = b1.astype(jnp.float32)
        params["w2"] = w2p.astype(wdtype)
        params["b2"] = b2p
    return params


# --------------------------------------------------------------------------- #
# kernels
# --------------------------------------------------------------------------- #
def _fused_kernel(x_ref, w_ref, b_ref, o_ref):
    # Single MXU matmul on the pre-folded weight + f32 bias add.
    y = jnp.dot(x_ref[...], w_ref[...], preferred_element_type=jnp.float32)
    o_ref[...] = (y + b_ref[...]).astype(o_ref.dtype)


def _two_stage_kernel(x_ref, w1_ref, b1_ref, w2_ref, b2_ref, o_ref, h_ref):
    # Grid = (batch tiles, class-column tiles).  The hidden activation for the
    # current batch tile is computed once (j == 0) into the f32 VMEM scratch
    # and reused for every class-column tile j.
    @pl.when(pl.program_id(1) == 0)
    def _():
        h = jnp.dot(x_ref[...], w1_ref[...], preferred_element_type=jnp.float32)
        h_ref[...] = h + b1_ref[...]

    h = h_ref[...].astype(w2_ref.dtype)
    y = jnp.dot(h, w2_ref[...], preferred_element_type=jnp.float32)
    o_ref[...] = (y + b2_ref[...]).astype(o_ref.dtype)


# --------------------------------------------------------------------------- #
# forward
# --------------------------------------------------------------------------- #
def l3_combine_forward(x, params, *, tile_b=None, tile_c=None, out_dtype=None):
    """y = Linear(128->C)(Linear(E->128)(x)); `params` from prepare_params()."""
    B, E = x.shape
    assert E == params["emb_dim"]
    C, C_pad = params["num_classes"], params["c_pad"]
    out_dtype = jnp.dtype(out_dtype) if out_dtype is not None else x.dtype

    stream_dtype = params["stream_dtype"]
    if stream_dtype is not None and x.dtype != jnp.dtype(stream_dtype):
        x = x.astype(stream_dtype)

    row_align = _row_align(x.dtype)
    budget = _vmem_budget_bytes()
    xb = jnp.dtype(x.dtype).itemsize
    ob = jnp.dtype(out_dtype).itemsize

    if params["mode"] == "fused":
        w, b = params["w"], params["b"]
        wb = jnp.dtype(w.dtype).itemsize
        if tile_b is None:
            tile_b = _pick_tile_b(B, row_align)
        assert tile_b == B or tile_b % row_align == 0, (
            f"tile_b={tile_b} must be a multiple of {row_align} for {x.dtype}")

        def vmem_use(tb):
            return (2 * tb * E * xb            # x tile (double-buffered)
                    + E * C_pad * wb           # fused weight (single-buffered)
                    + C_pad * 4                # fused bias
                    + 2 * tb * C_pad * ob)     # output tile (double-buffered)

        while vmem_use(tile_b) > budget and tile_b > row_align:
            tile_b = max(row_align, ((tile_b // 2) // row_align) * row_align)

        grid = (pl.cdiv(B, tile_b),)
        cost = pl.CostEstimate(
            flops=2 * B * E * C_pad, transcendentals=0,
            bytes_accessed=(B * E * xb + E * C_pad * wb
                            + C_pad * 4 + B * C_pad * ob))

        def run(single_buffer):
            return pl.pallas_call(
                _fused_kernel,
                out_shape=jax.ShapeDtypeStruct((B, C_pad), out_dtype),
                grid_spec=pltpu.PrefetchScalarGridSpec(
                    num_scalar_prefetch=0,
                    grid=grid,
                    in_specs=[
                        pl.BlockSpec((tile_b, E), lambda i: (i, 0)),
                        _const_spec((E, C_pad), lambda i: (0, 0), single_buffer),
                        _const_spec((1, C_pad), lambda i: (0, 0), single_buffer),
                    ],
                    out_specs=pl.BlockSpec((tile_b, C_pad), lambda i: (i, 0)),
                ),
                compiler_params=pltpu.CompilerParams(
                    dimension_semantics=("parallel",),
                    vmem_limit_bytes=int(budget)),
                cost_estimate=cost,
            )(x, w, b)

    else:  # two_stage
        w1, b1, w2, b2 = params["w1"], params["b1"], params["w2"], params["b2"]
        wb = jnp.dtype(w1.dtype).itemsize
        if tile_c is None:
            tile_c = min(C_pad, 1024)
        assert tile_c % _LANE == 0
        if tile_b is None:
            tile_b = _pick_tile_b(B, row_align)
        assert tile_b == B or tile_b % row_align == 0, (
            f"tile_b={tile_b} must be a multiple of {row_align} for {x.dtype}")

        def vmem_use(tb):
            return (2 * tb * E * xb                            # x tile
                    + E * _HIDDEN * wb + _HIDDEN * 4           # W1, b1 (1-buf)
                    + 2 * (_HIDDEN * tile_c * wb + tile_c * 4) # W2 / b2 tiles
                    + 2 * tb * tile_c * ob                     # output tile
                    + tb * _HIDDEN * 4)                        # hidden scratch

        while vmem_use(tile_b) > budget and tile_b > row_align:
            tile_b = max(row_align, ((tile_b // 2) // row_align) * row_align)

        grid = (pl.cdiv(B, tile_b), pl.cdiv(C_pad, tile_c))
        cost = pl.CostEstimate(
            flops=2 * B * _HIDDEN * (E + C_pad), transcendentals=0,
            bytes_accessed=(B * E * xb + (E + C_pad) * _HIDDEN * wb
                            + (_HIDDEN + C_pad) * 4 + B * C_pad * ob))

        def run(single_buffer):
            return pl.pallas_call(
                _two_stage_kernel,
                out_shape=jax.ShapeDtypeStruct((B, C_pad), out_dtype),
                grid_spec=pltpu.PrefetchScalarGridSpec(
                    num_scalar_prefetch=0,
                    grid=grid,
                    in_specs=[
                        pl.BlockSpec((tile_b, E), lambda i, j: (i, 0)),
                        _const_spec((E, _HIDDEN), lambda i, j: (0, 0), single_buffer),
                        _const_spec((1, _HIDDEN), lambda i, j: (0, 0), single_buffer),
                        pl.BlockSpec((_HIDDEN, tile_c), lambda i, j: (0, j)),
                        pl.BlockSpec((1, tile_c), lambda i, j: (0, j)),
                    ],
                    out_specs=pl.BlockSpec((tile_b, tile_c), lambda i, j: (i, j)),
                    scratch_shapes=[pltpu.VMEM((tile_b, _HIDDEN), jnp.float32)],
                ),
                compiler_params=pltpu.CompilerParams(
                    dimension_semantics=("parallel", "arbitrary"),
                    vmem_limit_bytes=int(budget)),
                cost_estimate=cost,
            )(x, w1, b1, w2, b2)

    try:
        out = run(True)
    except Exception:
        # Fallback for jax versions without BlockSpec(pipeline_mode=Buffered(1)).
        out = run(False)

    # Only the lane-padding on the class dim ever needs stripping (no batch pad).
    return out if C_pad == C else out[:, :C]


# --------------------------------------------------------------------------- #
# synthetic init (PyTorch nn.Linear-style uniform ranges)
# --------------------------------------------------------------------------- #
def init_params(key, emb_dim, num_classes, hidden=_HIDDEN):
    k1, k2, k3, k4 = jax.random.split(key, 4)
    lim1 = 1.0 / jnp.sqrt(emb_dim)
    lim2 = 1.0 / jnp.sqrt(hidden)
    w1 = jax.random.uniform(k1, (emb_dim, hidden), jnp.float32, -lim1, lim1)
    b1 = jax.random.uniform(k2, (1, hidden), jnp.float32, -lim1, lim1)
    w2 = jax.random.uniform(k3, (hidden, num_classes), jnp.float32, -lim2, lim2)
    b2 = jax.random.uniform(k4, (1, num_classes), jnp.float32, -lim2, lim2)
    return w1, b1, w2, b2


if __name__ == "__main__":
    key = jax.random.PRNGKey(0)
    kx, kp = jax.random.split(key)
    B, EMB, NCLS = 8, 32, 10

    x = jax.random.normal(kx, (B, EMB), jnp.float32)
    w1, b1, w2, b2 = init_params(kp, EMB, NCLS)
    y_ref = (x @ w1 + b1) @ w2 + b2

    # 1) fused path (auto-selected for small E*C), f32 streaming.
    params = prepare_params(w1, b1, w2, b2)
    y = jax.block_until_ready(l3_combine_forward(x, params))
    assert y.shape == (B, NCLS)
    assert jnp.allclose(y, y_ref, atol=1e-4, rtol=1e-4), (
        float(jnp.max(jnp.abs(y - y_ref))))

    # 2) two-stage path (the large-E/C kernel), ragged batch (no pad copy).
    params_ts = prepare_params(w1, b1, w2, b2, force_mode="two_stage")
    B2 = 20
    x2 = jax.random.normal(jax.random.PRNGKey(1), (B2, EMB), jnp.float32)
    y2 = jax.block_until_ready(l3_combine_forward(x2, params_ts, tile_b=8))
    y2_ref = (x2 @ w1 + b1) @ w2 + b2
    assert y2.shape == (B2, NCLS)
    assert jnp.allclose(y2, y2_ref, atol=1e-4, rtol=1e-4), (
        float(jnp.max(jnp.abs(y2 - y2_ref))))

    # 3) bf16 streaming of x / weights (f32 accumulation, f32 output).
    params_bf16 = prepare_params(w1, b1, w2, b2, stream_dtype=jnp.bfloat16)
    y3 = jax.block_until_ready(
        l3_combine_forward(x, params_bf16, out_dtype=jnp.float32))
    assert y3.shape == (B, NCLS)
    assert jnp.allclose(y3, y_ref, atol=5e-2, rtol=5e-2), (
        float(jnp.max(jnp.abs(y3 - y_ref))))

    print("KERNEL_OK")
</pallas_src>

<mosaic_0001>
module attributes {stable_mosaic.version = 11 : i64} {
  func.func @_fused_kernel(%arg0: i32, %arg1: memref<8x32xf32, #tpu.memory_space<vmem>>, %arg2: memref<32x128xf32, #tpu.memory_space<vmem>>, %arg3: memref<1x128xf32, #tpu.memory_space<vmem>>, %arg4: memref<8x128xf32, #tpu.memory_space<vmem>>) attributes {dimension_semantics = [#tpu.dimension_semantics<parallel>], iteration_bounds = array<i64: 1>, scalar_prefetch = 0 : i64, scratch_operands = 0 : i64, tpu.core_type = #tpu.core_type<tc>, window_params = [{transform_indices = @transform_0, window_bounds = array<i64: 8, 32>}, {pipeline_mode = #tpu.pipeline_mode<synchronous>, transform_indices = @transform_1, window_bounds = array<i64: 32, 128>}, {pipeline_mode = #tpu.pipeline_mode<synchronous>, transform_indices = @transform_2, window_bounds = array<i64: 1, 128>}, {transform_indices = @transform_3, window_bounds = array<i64: 8, 128>}]} {
    %c0 = arith.constant 0 : index
    %c0_0 = arith.constant 0 : index
    %0 = vector.load %arg1[%c0, %c0_0] : memref<8x32xf32, #tpu.memory_space<vmem>>, vector<8x32xf32>
    %c0_1 = arith.constant 0 : index
    %c0_2 = arith.constant 0 : index
    %1 = vector.load %arg2[%c0_1, %c0_2] : memref<32x128xf32, #tpu.memory_space<vmem>>, vector<32x128xf32>
    %cst = arith.constant dense<0.000000e+00> : vector<8x128xf32>
    %2 = tpu.matmul %0, %1, %cst {dimension_numbers = #tpu.dot_dimension_numbers<[1], [0], [0], [1], [0, 0, 1, 1], [], []>} : vector<8x32xf32>, vector<32x128xf32>, vector<8x128xf32> -> vector<8x128xf32>
    %c0_3 = arith.constant 0 : index
    %c0_4 = arith.constant 0 : index
    %3 = vector.load %arg3[%c0_3, %c0_4] : memref<1x128xf32, #tpu.memory_space<vmem>>, vector<1x128xf32>
    %4 = vector.broadcast %3 : vector<1x128xf32> to vector<8x128xf32>
    %5 = arith.addf %2, %4 : vector<8x128xf32>
    %c0_5 = arith.constant 0 : index
    %c0_6 = arith.constant 0 : index
    %6 = vector.load %arg4[%c0_5, %c0_6] : memref<8x128xf32, #tpu.memory_space<vmem>>, vector<8x128xf32>
    tpu.vector_store %arg4[%c0_5, %c0_6], %5 {strides = array<i32>} : memref<8x128xf32, #tpu.memory_space<vmem>>, vector<8x128xf32>,
    return
  }
  func.func @transform_0(%arg0: i32) -> (i32, i32) {
    %c0_i32 = arith.constant 0 : i32
    %c0_i32_0 = arith.constant 0 : i32
    return %arg0, %c0_i32 : i32, i32
  }
  func.func @transform_1(%arg0: i32) -> (i32, i32) {
    %c0_i32 = arith.constant 0 : i32
    %c0_i32_0 = arith.constant 0 : i32
    %c0_i32_1 = arith.constant 0 : i32
    return %c0_i32, %c0_i32_0 : i32, i32
  }
  func.func @transform_2(%arg0: i32) -> (i32, i32) {
    %c0_i32 = arith.constant 0 : i32
    %c0_i32_0 = arith.constant 0 : i32
    %c0_i32_1 = arith.constant 0 : i32
    return %c0_i32, %c0_i32_0 : i32, i32
  }
  func.func @transform_3(%arg0: i32) -> (i32, i32) {
    %c0_i32 = arith.constant 0 : i32
    %c0_i32_0 = arith.constant 0 : i32
    return %arg0, %c0_i32 : i32, i32
  }
}

module attributes {stable_mosaic.version = 11 : i64} {
  func.func @_fused_kernel(%arg0: i32, %arg1: memref<8x32xf32, #tpu.memory_space<vmem>>, %arg2: memref<32x128xf32, #tpu.memory_space<vmem>>, %arg3: memref<1x128xf32, #tpu.memory_space<vmem>>, %arg4: memref<8x128xf32, #tpu.memory_space<vmem>>) attributes {dimension_semantics = [#tpu.dimension_semantics<parallel>], iteration_bounds = array<i64: 1>, scalar_prefetch = 0 : i64, scratch_operands = 0 : i64, tpu.core_type = #tpu.core_type<tc>, window_params = [{transform_indices = @transform_0, window_bounds = array<i64: 8, 32>}, {pipeline_mode = #tpu.pipeline_mode<synchronous>, transform_indices = @transform_1, window_bounds = array<i64: 32, 128>}, {pipeline_mode = #tpu.pipeline_mode<synchronous>, transform_indices = @transform_2, window_bounds = array<i64: 1, 128>}, {transform_indices = @transform_3, window_bounds = array<i64: 8, 128>}]} {
    %c0 = arith.constant 0 : index
    %c0_0 = arith.constant 0 : index
    %0 = vector.load %arg1[%c0, %c0_0] : memref<8x32xf32, #tpu.memory_space<vmem>>, vector<8x32xf32>
    %c0_1 = arith.constant 0 : index
    %c0_2 = arith.constant 0 : index
    %1 = vector.load %arg2[%c0_1, %c0_2] : memref<32x128xf32, #tpu.memory_space<vmem>>, vector<32x128xf32>
    %cst = arith.constant dense<0.000000e+00> : vector<8x128xf32>
    %2 = tpu.matmul %0, %1, %cst {dimension_numbers = #tpu.dot_dimension_numbers<[1], [0], [0], [1], [0, 0, 1, 1], [], []>} : vector<8x32xf32>, vector<32x128xf32>, vector<8x128xf32> -> vector<8x128xf32>
    %c0_3 = arith.constant 0 : index
    %c0_4 = arith.constant 0 : index
    %3 = vector.load %arg3[%c0_3, %c0_4] : memref<1x128xf32, #tpu.memory_space<vmem>>, vector<1x128xf32>
    %4 = vector.broadcast %3 : vector<1x128xf32> to vector<8x128xf32>
    %5 = arith.addf %2, %4 : vector<8x128xf32>
    %c0_5 = arith.constant 0 : index
    %c0_6 = arith.constant 0 : index
    %6 = vector.load %arg4[%c0_5, %c0_6] : memref<8x128xf32, #tpu.memory_space<vmem>>, vector<8x128xf32>
    tpu.vector_store %arg4[%c0_5, %c0_6], %5 {strides = array<i32>} : memref<8x128xf32, #tpu.memory_space<vmem>>, vector<8x128xf32>,
    return
  }
  func.func @transform_0(%arg0: i32) -> (i32, i32) {
    %c0_i32 = arith.constant 0 : i32
    %c0_i32_0 = arith.constant 0 : i32
    return %arg0, %c0_i32 : i32, i32
  }
  func.func @transform_1(%arg0: i32) -> (i32, i32) {
    %c0_i32 = arith.constant 0 : i32
    %c0_i32_0 = arith.constant 0 : i32
    %c0_i32_1 = arith.constant 0 : i32
    return %c0_i32, %c0_i32_0 : i32, i32
  }
  func.func @transform_2(%arg0: i32) -> (i32, i32) {
    %c0_i32 = arith.constant 0 : i32
    %c0_i32_0 = arith.constant 0 : i32
    %c0_i32_1 = arith.constant 0 : i32
    return %c0_i32, %c0_i32_0 : i32, i32
  }
  func.func @transform_3(%arg0: i32) -> (i32, i32) {
    %c0_i32 = arith.constant 0 : i32
    %c0_i32_0 = arith.constant 0 : i32
    return %arg0, %c0_i32 : i32, i32
  }
}

</mosaic_0001>

<llo_original>
// kernel: tpu_custom_call.1
$region0: #{tpu_custom_call.1}
  #allocation0 [shape = 'u32[]', space=smem, size = 0x4, offset = 0x4, fixed_abs, tag = 'smem constant byte address 0x4 - core index']
  #allocation1 [shape = 'u32[144,128]{1,0:T(1,128)}', space=vmem, size = 0x12000, scoped, tag = 'internal scratch']
  %s0 = inlined_call_operand.hbm [shape: f32[8,32], index: 0, kind: input, shape index: {}]
  %s1 = inlined_call_operand.hbm [shape: f32[32,128], index: 1, kind: input, shape index: {}]
  %s2 = inlined_call_operand.vmem [shape: f32[1,128], index: 2, kind: input, shape index: {}]
  %s3 = inlined_call_operand.hbm [shape: f32[8,128], index: 3, kind: output, shape index: {}]
  %s4 = sld [smem:[#allocation0]]
  $region30: #{tpu_custom_call.1} parent=0
    _
  %s6 = ssub.s32 1, %s4
  %s7 = scalar_select 0, %s6, %s4
  $region1: #{tpu_custom_call.1} parent=0
    #allocation2 [shape = 'u8[4096]{0}', space=vmem, size = 0x1000, scoped, tag = 'input window, operand 0, single buffered']
    #allocation3 [shape = 's32[1]{0}', space=sflag, size = 0x4, scoped, tag = 'scoped memory for tpu_custom_call.1']
    #allocation4 [shape = 's32[1]{0}', space=sflag, size = 0x4, scoped, tag = 'scoped memory for tpu_custom_call.1']
    #allocation5 [shape = 'u8[16384]{0}', space=vmem, size = 0x4000, scoped, tag = 'input window, operand 1, single buffered']
    #allocation6 [shape = 's32[1]{0}', space=sflag, size = 0x4, scoped, tag = 'scoped memory for tpu_custom_call.1']
    #allocation7 [shape = 'u8[4096]{0}', space=vmem, size = 0x1000, scoped, tag = 'output window, operand 0, single buffered']
    %8 = vsyncpa [#allocation3], 0
    %9 = vsyncpa [#allocation6], 0
    %10 = vsyncpa [#allocation4], 0
    // Predicated region
    $region2: #{tpu_custom_call.1} parent=1 // pred_check
      _
    $region3: #{tpu_custom_call.1} parent=1 // pred_check_branch
      %12 = sbr.rel (0) target = $region5
    $region4: #{tpu_custom_call.1} parent=1 // pred_region
      %s14 = ssub.s32 128, 128
      %15 = vsyncadd [#allocation3], %s14
      %s17 = sshll.u32 [#allocation2], 4
      %s18 = int_to_ptr.vmem [resolvable:$true] %s17
      %20 = dma.hbm_to_vmem [thread:$0]  %s0, 128, %s18, [#allocation3]
    $region5: #{tpu_custom_call.1} parent=1 // pred_fallthru
      _
    // Predicated region
    $region6: #{tpu_custom_call.1} parent=1 // pred_check
      _
    $region7: #{tpu_custom_call.1} parent=1 // pred_check_branch
      %22 = sbr.rel (0) target = $region9
    $region8: #{tpu_custom_call.1} parent=1 // pred_region
      %s24 = ssub.s32 512, 512
      %25 = vsyncadd [#allocation6], %s24
      %s26 = sshll.u32 [#allocation5], 4
      %s27 = int_to_ptr.vmem [resolvable:$true] %s26
      %32 = dma.hbm_to_vmem [thread:$0]  %s1, 512, %s27, [#allocation6], 128, 128, 8
    $region9: #{tpu_custom_call.1} parent=1 // pred_fallthru
      _
    // Predicated region
    $region10: #{tpu_custom_call.1} parent=1 // pred_check
      _
    $region11: #{tpu_custom_call.1} parent=1 // pred_check_branch
      %34 = sbr.rel (0) target = $region13
    $region12: #{tpu_custom_call.1} parent=1 // pred_region
      _
    $region13: #{tpu_custom_call.1} parent=1 // pred_fallthru
      _
    // Predicated region
    $region14: #{tpu_custom_call.1} parent=1 // pred_check
      _
    $region15: #{tpu_custom_call.1} parent=1 // pred_check_branch
      %36 = sbr.rel (0) target = $region17
    $region16: #{tpu_custom_call.1} parent=1 // pred_region
      %37 = dma.done [#allocation3], 128
    $region17: #{tpu_custom_call.1} parent=1 // pred_fallthru
      _
    // Predicated region
    $region18: #{tpu_custom_call.1} parent=1 // pred_check
      _
    $region19: #{tpu_custom_call.1} parent=1 // pred_check_branch
      %39 = sbr.rel (0) target = $region21
    $region20: #{tpu_custom_call.1} parent=1 // pred_region
      %40 = dma.done [#allocation6], 512
    $region21: #{tpu_custom_call.1} parent=1 // pred_fallthru
      _
    %v41 = vld [vmem:[#allocation2] sm:$0xff]
    %v42 = vld [vmem:[#allocation5] sm:$0xff]
    %v43 = vld [vmem:[#allocation5 + $0x8] sm:$0xff]
    %v44 = vld [vmem:[#allocation5 + $0x10] sm:$0xff]
    %v45 = vld [vmem:[#allocation5 + $0x18] sm:$0xff]
    %v46 = vld [vmem:[%s2] sm:$0x1]
    %v48 = vlaneseq
    %v49 = vshrl.u32 %v48, 7
    %v50 = vsub.s32 0, %v49
    %v51 = vrot.slane %v46, %v50
    %vm53 = vcmask 261120
    %v55 = vsel %vm53, %v41, 0
    %57 = vmatprep.subr.mxu0 0.0
    %58 = vmatpush1.msra.mxu0 0.0
    %59 = vmatprep.subr.mxu0 0.0
    %60 = vmatpush1.msra.mxu0 0.0
    %61 = vmatprep.subr.mxu0 0.0
    %62 = vmatpush1.msra.mxu0 0.0
    %63 = vmatprep.subr.mxu0 0.0
    %64 = vmatpush1.msra.mxu0 0.0
    %65 = vmatprep.subr.mxu0 0.0
    %66 = vmatpush1.msra.mxu0 0.0
    %67 = vmatprep.subr.mxu0 0.0
    %68 = vmatpush1.msra.mxu0 0.0
    %69 = vmatprep.subr.mxu0 0.0
    %70 = vmatpush1.msra.mxu0 0.0
    %71 = vmatprep.subr.mxu0 0.0
    %72 = vmatpush1.msra.mxu0 0.0
    %73 = vmatprep.subr.mxu0 0.0
    %74 = vmatpush1.msra.mxu0 0.0
    %75 = vmatprep.subr.mxu0 0.0
    %76 = vmatpush1.msra.mxu0 0.0
    %77 = vmatprep.subr.mxu0 0.0
    %78 = vmatpush1.msra.mxu0 0.0
    %79 = vmatprep.subr.mxu0 0.0
    %80 = vmatpush1.msra.mxu0 0.0
    %81 = vmatprep.subr.mxu0 0.0
    %82 = vmatpush1.msra.mxu0 %v45
    %83 = vmatprep.subr.mxu0 0.0
    %84 = vmatpush1.msra.mxu0 %v44
    %85 = vmatprep.subr.mxu0 0.0
    %86 = vmatpush1.msra.mxu0 %v43
    %87 = vmatprep.subr.mxu0 0.0
    %88 = vmatpush1.msra.mxu0 %v42
    %89 = vmatprep.subr.mxu0 0.0
    %90 = vmatpush2.msra.mxu0 0.0
    %91 = vmatprep.subr.mxu0 0.0
    %92 = vmatpush2.msra.mxu0 0.0
    %93 = vmatprep.subr.mxu0 0.0
    %94 = vmatpush2.msra.mxu0 0.0
    %95 = vmatprep.subr.mxu0 0.0
    %96 = vmatpush2.msra.mxu0 0.0
    %97 = vmatprep.subr.mxu0 0.0
    %98 = vmatpush2.msra.mxu0 0.0
    %99 = vmatprep.subr.mxu0 0.0
    %100 = vmatpush2.msra.mxu0 0.0
    %101 = vmatprep.subr.mxu0 0.0
    %102 = vmatpush2.msra.mxu0 0.0
    %103 = vmatprep.subr.mxu0 0.0
    %104 = vmatpush2.msra.mxu0 0.0
    %105 = vmatprep.subr.mxu0 0.0
    %106 = vmatpush2.msra.mxu0 0.0
    %107 = vmatprep.subr.mxu0 0.0
    %108 = vmatpush2.msra.mxu0 0.0
    %109 = vmatprep.subr.mxu0 0.0
    %110 = vmatpush2.msra.mxu0 0.0
    %111 = vmatprep.subr.mxu0 0.0
    %112 = vmatpush2.msra.mxu0 0.0
    %113 = vmatprep.subr.mxu0 0.0
    %114 = vmatpush2.msra.mxu0 0.0
    %115 = vmatprep.subr.mxu0 0.0
    %116 = vmatpush2.msra.mxu0 0.0
    %117 = vmatprep.subr.mxu0 0.0
    %118 = vmatpush2.msra.mxu0 0.0
    %119 = vmatprep.subr.mxu0 0.0
    %120 = vmatpush2.msra.mxu0 0.0
    %121 = vmatprep.mubr.f32.mxu0 0.0
    %122 = vmatmul.mubr.f32.gmra.mxu0 %v55
    %v123 = vpop.f32.mrf.mxu0
    %v124 = vadd.f32 %v51, %v123
    %v125 = vpop.f32.mrf.mxu0
    %126 = vdwg.mxu0
    %127 = vst [vmem:[#allocation7] sm:$0xff] %v124
    // Predicated region
    $region22: #{tpu_custom_call.1} parent=1 // pred_check
      _
    $region23: #{tpu_custom_call.1} parent=1 // pred_check_branch
      %129 = sbr.rel (0) target = $region25
    $region24: #{tpu_custom_call.1} parent=1 // pred_region
      %s131 = ssub.s32 128, 128
      %132 = vsyncadd [#allocation4], %s131
      %s134 = sshll.u32 [#allocation7], 4
      %s135 = int_to_ptr.vmem [resolvable:$true] %s134
      %137 = dma.vmem_to_hbm [thread:$0]  %s135, 128, %s3, [#allocation4]
    $region25: #{tpu_custom_call.1} parent=1 // pred_fallthru
      _
    // Predicated region
    $region26: #{tpu_custom_call.1} parent=1 // pred_check
      _
    $region27: #{tpu_custom_call.1} parent=1 // pred_check_branch
      %139 = sbr.rel (0) target = $region29
    $region28: #{tpu_custom_call.1} parent=1 // pred_region
      %140 = dma.done [#allocation4], 128
    $region29: #{tpu_custom_call.1} parent=1 // pred_fallthru
      _
    %141 = vsyncpa [#allocation3], 1
    %142 = vsyncpa [#allocation6], 1
    %143 = vsyncpa [#allocation4], 1

// kernel: tpu_custom_call.1
$region0: #{tpu_custom_call.1}
  #allocation0 [shape = 'u32[]', space=smem, size = 0x4, offset = 0x4, fixed_abs, tag = 'smem constant byte address 0x4 - core index']
  #allocation1 [shape = 'u32[144,128]{1,0:T(1,128)}', space=vmem, size = 0x12000, scoped, tag = 'internal scratch']
  %s0 = inlined_call_operand.hbm [shape: f32[8,32], index: 0, kind: input, shape index: {}]
  %s1 = inlined_call_operand.hbm [shape: f32[32,128], index: 1, kind: input, shape index: {}]
  %s2 = inlined_call_operand.vmem [shape: f32[1,128], index: 2, kind: input, shape index: {}]
  %s3 = inlined_call_operand.hbm [shape: f32[8,128], index: 3, kind: output, shape index: {}]
  %s4 = sld [smem:[#allocation0]]
  $region30: #{tpu_custom_call.1} parent=0
    _
  %s6 = ssub.s32 1, %s4
  %s7 = scalar_select 0, %s6, %s4
  $region1: #{tpu_custom_call.1} parent=0
    #allocation2 [shape = 'u8[4096]{0}', space=vmem, size = 0x1000, scoped, tag = 'input window, operand 0, single buffered']
    #allocation3 [shape = 's32[1]{0}', space=sflag, size = 0x4, scoped, tag = 'scoped memory for tpu_custom_call.1']
    #allocation4 [shape = 's32[1]{0}', space=sflag, size = 0x4, scoped, tag = 'scoped memory for tpu_custom_call.1']
    #allocation5 [shape = 'u8[16384]{0}', space=vmem, size = 0x4000, scoped, tag = 'input window, operand 1, single buffered']
    #allocation6 [shape = 's32[1]{0}', space=sflag, size = 0x4, scoped, tag = 'scoped memory for tpu_custom_call.1']
    #allocation7 [shape = 'u8[4096]{0}', space=vmem, size = 0x1000, scoped, tag = 'output window, operand 0, single buffered']
    %8 = vsyncpa [#allocation3], 0
    %9 = vsyncpa [#allocation6], 0
    %10 = vsyncpa [#allocation4], 0
    // Predicated region
    $region2: #{tpu_custom_call.1} parent=1 // pred_check
      _
    $region3: #{tpu_custom_call.1} parent=1 // pred_check_branch
      %12 = sbr.rel (0) target = $region5
    $region4: #{tpu_custom_call.1} parent=1 // pred_region
      %s14 = ssub.s32 128, 128
      %15 = vsyncadd [#allocation3], %s14
      %s17 = sshll.u32 [#allocation2], 4
      %s18 = int_to_ptr.vmem [resolvable:$true] %s17
      %20 = dma.hbm_to_vmem [thread:$0]  %s0, 128, %s18, [#allocation3]
    $region5: #{tpu_custom_call.1} parent=1 // pred_fallthru
      _
    // Predicated region
    $region6: #{tpu_custom_call.1} parent=1 // pred_check
      _
    $region7: #{tpu_custom_call.1} parent=1 // pred_check_branch
      %22 = sbr.rel (0) target = $region9
    $region8: #{tpu_custom_call.1} parent=1 // pred_region
      %s24 = ssub.s32 512, 512
      %25 = vsyncadd [#allocation6], %s24
      %s26 = sshll.u32 [#allocation5], 4
      %s27 = int_to_ptr.vmem [resolvable:$true] %s26
      %32 = dma.hbm_to_vmem [thread:$0]  %s1, 512, %s27, [#allocation6], 128, 128, 8
    $region9: #{tpu_custom_call.1} parent=1 // pred_fallthru
      _
    // Predicated region
    $region10: #{tpu_custom_call.1} parent=1 // pred_check
      _
    $region11: #{tpu_custom_call.1} parent=1 // pred_check_branch
      %34 = sbr.rel (0) target = $region13
    $region12: #{tpu_custom_call.1} parent=1 // pred_region
      _
    $region13: #{tpu_custom_call.1} parent=1 // pred_fallthru
      _
    // Predicated region
    $region14: #{tpu_custom_call.1} parent=1 // pred_check
      _
    $region15: #{tpu_custom_call.1} parent=1 // pred_check_branch
      %36 = sbr.rel (0) target = $region17
    $region16: #{tpu_custom_call.1} parent=1 // pred_region
      %37 = dma.done [#allocation3], 128
    $region17: #{tpu_custom_call.1} parent=1 // pred_fallthru
      _
    // Predicated region
    $region18: #{tpu_custom_call.1} parent=1 // pred_check
      _
    $region19: #{tpu_custom_call.1} parent=1 // pred_check_branch
      %39 = sbr.rel (0) target = $region21
    $region20: #{tpu_custom_call.1} parent=1 // pred_region
      %40 = dma.done [#allocation6], 512
    $region21: #{tpu_custom_call.1} parent=1 // pred_fallthru
      _
    %v41 = vld [vmem:[#allocation2] sm:$0xff]
    %v42 = vld [vmem:[#allocation5] sm:$0xff]
    %v43 = vld [vmem:[#allocation5 + $0x8] sm:$0xff]
    %v44 = vld [vmem:[#allocation5 + $0x10] sm:$0xff]
    %v45 = vld [vmem:[#allocation5 + $0x18] sm:$0xff]
    %v46 = vld [vmem:[%s2] sm:$0x1]
    %v48 = vlaneseq
    %v49 = vshrl.u32 %v48, 7
    %v50 = vsub.s32 0, %v49
    %v51 = vrot.slane %v46, %v50
    %vm53 = vcmask 261120
    %v55 = vsel %vm53, %v41, 0
    %57 = vmatprep.subr.mxu0 0.0
    %58 = vmatpush1.msra.mxu0 0.0
    %59 = vmatprep.subr.mxu0 0.0
    %60 = vmatpush1.msra.mxu0 0.0
    %61 = vmatprep.subr.mxu0 0.0
    %62 = vmatpush1.msra.mxu0 0.0
    %63 = vmatprep.subr.mxu0 0.0
    %64 = vmatpush1.msra.mxu0 0.0
    %65 = vmatprep.subr.mxu0 0.0
    %66 = vmatpush1.msra.mxu0 0.0
    %67 = vmatprep.subr.mxu0 0.0
    %68 = vmatpush1.msra.mxu0 0.0
    %69 = vmatprep.subr.mxu0 0.0
    %70 = vmatpush1.msra.mxu0 0.0
    %71 = vmatprep.subr.mxu0 0.0
    %72 = vmatpush1.msra.mxu0 0.0
    %73 = vmatprep.subr.mxu0 0.0
    %74 = vmatpush1.msra.mxu0 0.0
    %75 = vmatprep.subr.mxu0 0.0
    %76 = vmatpush1.msra.mxu0 0.0
    %77 = vmatprep.subr.mxu0 0.0
    %78 = vmatpush1.msra.mxu0 0.0
    %79 = vmatprep.subr.mxu0 0.0
    %80 = vmatpush1.msra.mxu0 0.0
    %81 = vmatprep.subr.mxu0 0.0
    %82 = vmatpush1.msra.mxu0 %v45
    %83 = vmatprep.subr.mxu0 0.0
    %84 = vmatpush1.msra.mxu0 %v44
    %85 = vmatprep.subr.mxu0 0.0
    %86 = vmatpush1.msra.mxu0 %v43
    %87 = vmatprep.subr.mxu0 0.0
    %88 = vmatpush1.msra.mxu0 %v42
    %89 = vmatprep.subr.mxu0 0.0
    %90 = vmatpush2.msra.mxu0 0.0
    %91 = vmatprep.subr.mxu0 0.0
    %92 = vmatpush2.msra.mxu0 0.0
    %93 = vmatprep.subr.mxu0 0.0
    %94 = vmatpush2.msra.mxu0 0.0
    %95 = vmatprep.subr.mxu0 0.0
    %96 = vmatpush2.msra.mxu0 0.0
    %97 = vmatprep.subr.mxu0 0.0
    %98 = vmatpush2.msra.mxu0 0.0
    %99 = vmatprep.subr.mxu0 0.0
    %100 = vmatpush2.msra.mxu0 0.0
    %101 = vmatprep.subr.mxu0 0.0
    %102 = vmatpush2.msra.mxu0 0.0
    %103 = vmatprep.subr.mxu0 0.0
    %104 = vmatpush2.msra.mxu0 0.0
    %105 = vmatprep.subr.mxu0 0.0
    %106 = vmatpush2.msra.mxu0 0.0
    %107 = vmatprep.subr.mxu0 0.0
    %108 = vmatpush2.msra.mxu0 0.0
    %109 = vmatprep.subr.mxu0 0.0
    %110 = vmatpush2.msra.mxu0 0.0
    %111 = vmatprep.subr.mxu0 0.0
    %112 = vmatpush2.msra.mxu0 0.0
    %113 = vmatprep.subr.mxu0 0.0
    %114 = vmatpush2.msra.mxu0 0.0
    %115 = vmatprep.subr.mxu0 0.0
    %116 = vmatpush2.msra.mxu0 0.0
    %117 = vmatprep.subr.mxu0 0.0
    %118 = vmatpush2.msra.mxu0 0.0
    %119 = vmatprep.subr.mxu0 0.0
    %120 = vmatpush2.msra.mxu0 0.0
    %121 = vmatprep.mubr.f32.mxu0 0.0
    %122 = vmatmul.mubr.f32.gmra.mxu0 %v55
    %v123 = vpop.f32.mrf.mxu0
    %v124 = vadd.f32 %v51, %v123
    %v125 = vpop.f32.mrf.mxu0
    %126 = vdwg.mxu0
    %127 = vst [vmem:[#allocation7] sm:$0xff] %v124
    // Predicated region
    $region22: #{tpu_custom_call.1} parent=1 // pred_check
      _
    $region23: #{tpu_custom_call.1} parent=1 // pred_check_branch
      %129 = sbr.rel (0) target = $region25
    $region24: #{tpu_custom_call.1} parent=1 // pred_region
      %s131 = ssub.s32 128, 128
      %132 = vsyncadd [#allocation4], %s131
      %s134 = sshll.u32 [#allocation7], 4
      %s135 = int_to_ptr.vmem [resolvable:$true] %s134
      %137 = dma.vmem_to_hbm [thread:$0]  %s135, 128, %s3, [#allocation4]
    $region25: #{tpu_custom_call.1} parent=1 // pred_fallthru
      _
    // Predicated region
    $region26: #{tpu_custom_call.1} parent=1 // pred_check
      _
    $region27: #{tpu_custom_call.1} parent=1 // pred_check_branch
      %139 = sbr.rel (0) target = $region29
    $region28: #{tpu_custom_call.1} parent=1 // pred_region
      %140 = dma.done [#allocation4], 128
    $region29: #{tpu_custom_call.1} parent=1 // pred_fallthru
      _
    %141 = vsyncpa [#allocation3], 1
    %142 = vsyncpa [#allocation6], 1
    %143 = vsyncpa [#allocation4], 1

</llo_original>
